<compile_context>
chip_gen: v5e
topology: v5e:2x2
jax: 0.10.0
libtpu: 0.0.40
codegen_flags: <defaults>
</compile_context>

<pallas_src>
import functools

import jax
import jax.numpy as jnp
from jax import lax
from jax.experimental import pallas as pl
from jax.experimental.pallas import tpu as pltpu


def _round_up(v, m):
    return (v + m - 1) // m * m


def _pairnorm_si_scs_kernel(x_ref, mean_ref, o_ref, *, mode, scale):
    """Row-tile kernel for 'PN-SI' / 'PN-SCS'.

    x_ref: (TM, D) input tile (native dtype), mean_ref: (1, D) f32 column
    mean, o_ref: (TM, D) output tile.
    """
    x = x_ref[...].astype(jnp.float32)
    col_mean = mean_ref[...]                               # (1, D), broadcasts over rows

    if mode == "PN-SI":
        xc = x - col_mean
        ss = jnp.sum(xc * xc, axis=1, keepdims=True)       # (TM, 1)
        inv = scale * lax.rsqrt(1e-6 + ss)                 # per-row rsqrt on the EUP
        out = xc * inv
    else:  # 'PN-SCS': row norm of the ORIGINAL x, then subtract col_mean
        ss = jnp.sum(x * x, axis=1, keepdims=True)         # (TM, 1)
        inv = scale * lax.rsqrt(1e-6 + ss)
        out = x * inv - col_mean

    o_ref[...] = out.astype(o_ref.dtype)


def _pairnorm_pn_kernel(x_ref, mean_ref, s_ref, o_ref):
    """Row-tile kernel for 'PN': out = (x - col_mean) * s,
    with s = scale / rownorm_mean passed as an SMEM scalar."""
    s = s_ref[0, 0]
    x = x_ref[...].astype(jnp.float32)
    o_ref[...] = ((x - mean_ref[...]) * s).astype(o_ref.dtype)


def _pick_tile(N, D):
    """Row-tile height: ~4 MiB of f32 per tile, while keeping >= ~4 grid steps
    when N allows it (v7x megacore + pipelining)."""
    max_tile_bytes = 4 * 1024 * 1024
    tm = max(8, (max_tile_bytes // max(1, D * 4)) // 8 * 8)
    tm = min(tm, max(8, _round_up(pl.cdiv(N, 4), 8)))
    if tm >= N:
        tm = N                                   # tiny input: one full-height block (legal: equals array dim)
    return tm


@functools.partial(jax.jit, static_argnames=("mode", "scale"))
def _pairnorm_impl(x, *, mode, scale):
    N, D = x.shape
    orig_dtype = x.dtype
    xf = x.astype(jnp.float32)                   # fuses with the reductions below under jit (single read)

    tm = _pick_tile(N, D)
    grid = (pl.cdiv(N, tm),)

    row_spec = pl.BlockSpec((tm, D), lambda i: (i, 0))     # full-extent feature dim: no pad/slice copies
    vec_spec = pl.BlockSpec((1, D), lambda i: (0, 0))
    compiler_params = pltpu.CompilerParams(
        dimension_semantics=("parallel",),                 # independent row tiles -> megacore sharding
        vmem_limit_bytes=32 * 1024 * 1024,                 # explicit: v5e scoped default (16 MiB) is too small
    )

    if mode == "PN":
        # One-pass cross-row statistics (single HBM read of x):
        #   mean_i ||x_i - mu||^2 = mean||x||^2 - ||mu||^2
        col_sum = jnp.sum(xf, axis=0, keepdims=True)                       # (1, D)
        sq_sum = jnp.sum(xf * xf)                                          # scalar, fuses with col_sum
        col_mean = col_sum / N
        var = jnp.maximum(sq_sum / N - jnp.sum(col_mean * col_mean), 0.0)  # guard tiny negative (cancellation)
        rownorm_mean = jnp.sqrt(1e-6 + var)
        s = jnp.reshape(scale / rownorm_mean, (1, 1)).astype(jnp.float32)
        smem_spec = pl.BlockSpec(memory_space=pltpu.MemorySpace.SMEM)
        return pl.pallas_call(
            _pairnorm_pn_kernel,
            out_shape=jax.ShapeDtypeStruct((N, D), orig_dtype),
            grid_spec=pltpu.PrefetchScalarGridSpec(
                num_scalar_prefetch=0,
                grid=grid,
                in_specs=[row_spec, vec_spec, smem_spec],
                out_specs=row_spec,
            ),
            compiler_params=compiler_params,
        )(x, col_mean, s)

    # 'PN-SI' / 'PN-SCS': only cross-row statistic is the column mean.
    col_mean = jnp.mean(xf, axis=0, keepdims=True)                         # (1, D) f32
    kernel = functools.partial(_pairnorm_si_scs_kernel, mode=mode, scale=scale)
    return pl.pallas_call(
        kernel,
        out_shape=jax.ShapeDtypeStruct((N, D), orig_dtype),
        grid_spec=pltpu.PrefetchScalarGridSpec(
            num_scalar_prefetch=0,
            grid=grid,
            in_specs=[row_spec, vec_spec],
            out_specs=row_spec,
        ),
        compiler_params=compiler_params,
    )(x, col_mean)


def pairnorm(x, mode="PN-SCS", scale=1.0):
    """PairNorm forward pass. x: [N, D] node features (rows = nodes)."""
    assert mode in ["None", "PN", "PN-SI", "PN-SCS"]
    if mode == "None":
        return x
    return _pairnorm_impl(x, mode=mode, scale=float(scale))


def _pairnorm_ref(x, mode="PN-SCS", scale=1.0):
    """Pure-JAX reference mirroring the PyTorch module exactly."""
    if mode == "None":
        return x
    x = x.astype(jnp.float32)
    col_mean = x.mean(axis=0)
    if mode == "PN":
        x = x - col_mean
        rownorm_mean = jnp.sqrt(1e-6 + (x ** 2).sum(axis=1).mean())
        x = scale * x / rownorm_mean
    if mode == "PN-SI":
        x = x - col_mean
        rn = jnp.sqrt(1e-6 + (x ** 2).sum(axis=1, keepdims=True))
        x = scale * x / rn
    if mode == "PN-SCS":
        rn = jnp.sqrt(1e-6 + (x ** 2).sum(axis=1, keepdims=True))
        x = scale * x / rn - col_mean
    return x


if __name__ == "__main__":
    key = jax.random.PRNGKey(0)

    # Small GNN-style feature matrix: N nodes x D hidden features.
    N, D = 128, 64
    x = jax.random.normal(key, (N, D), dtype=jnp.float32)

    # Default module config: mode='PN-SCS', scale=1.0
    out = jax.block_until_ready(pairnorm(x, mode="PN-SCS", scale=1.0))
    ref = _pairnorm_ref(x, mode="PN-SCS", scale=1.0)
    assert out.shape == x.shape and out.dtype == x.dtype
    assert jnp.allclose(out, ref, atol=2e-5, rtol=2e-5)

    # Other normalization modes (incl. the fused one-pass 'PN' statistics +
    # SMEM scalar path).
    for m in ["PN", "PN-SI"]:
        o = jax.block_until_ready(pairnorm(x, mode=m, scale=1.0))
        assert jnp.allclose(o, _pairnorm_ref(x, mode=m, scale=1.0), atol=2e-5, rtol=2e-5)

    # Multi-tile pipelined path with a non-128-multiple feature dim: no pad /
    # slice copies around the pallas_call, masked lane stores on (N, 100).
    x2 = jax.random.normal(jax.random.PRNGKey(1), (2500, 100), dtype=jnp.float32)
    o2 = jax.block_until_ready(pairnorm(x2, mode="PN-SCS", scale=1.0))
    assert jnp.allclose(o2, _pairnorm_ref(x2, mode="PN-SCS", scale=1.0), atol=2e-5, rtol=2e-5)

    print("KERNEL_OK")
</pallas_src>

<mosaic_0001>
module attributes {stable_mosaic.version = 11 : i64} {
  func.func @_pairnorm_si_scs_kernel(%arg0: i32, %arg1: memref<32x64xf32, #tpu.memory_space<vmem>>, %arg2: memref<1x64xf32, #tpu.memory_space<vmem>>, %arg3: memref<32x64xf32, #tpu.memory_space<vmem>>) attributes {dimension_semantics = [#tpu.dimension_semantics<parallel>], iteration_bounds = array<i64: 4>, scalar_prefetch = 0 : i64, scratch_operands = 0 : i64, tpu.core_type = #tpu.core_type<tc>, window_params = [{transform_indices = @transform_0, window_bounds = array<i64: 32, 64>}, {pipeline_mode = #tpu.pipeline_mode<synchronous>, transform_indices = @transform_1, window_bounds = array<i64: 1, 64>}, {transform_indices = @transform_2, window_bounds = array<i64: 32, 64>}]} {
    %c0 = arith.constant 0 : index
    %c0_0 = arith.constant 0 : index
    %0 = vector.load %arg1[%c0, %c0_0] : memref<32x64xf32, #tpu.memory_space<vmem>>, vector<32x64xf32>
    %c0_1 = arith.constant 0 : index
    %c0_2 = arith.constant 0 : index
    %1 = vector.load %arg2[%c0_1, %c0_2] : memref<1x64xf32, #tpu.memory_space<vmem>>, vector<1x64xf32>
    %2 = arith.mulf %0, %0 : vector<32x64xf32>
    %cst = arith.constant dense<0.000000e+00> : vector<32xf32>
    %3 = vector.multi_reduction <add>, %2, %cst [1] : vector<32x64xf32> to vector<32xf32>
    %4 = vector.shape_cast %3 : vector<32xf32> to vector<32x1xf32>
    %cst_3 = arith.constant 9.99999997E-7 : f32
    %5 = vector.broadcast %cst_3 : f32 to vector<32x1xf32>
    %6 = arith.addf %5, %4 : vector<32x1xf32>
    %7 = math.rsqrt %6 : vector<32x1xf32>
    %cst_4 = arith.constant 1.000000e+00 : f32
    %8 = vector.broadcast %cst_4 : f32 to vector<32x1xf32>
    %9 = arith.mulf %8, %7 : vector<32x1xf32>
    %10 = vector.broadcast %9 : vector<32x1xf32> to vector<32x64xf32>
    %11 = arith.mulf %0, %10 : vector<32x64xf32>
    %12 = vector.broadcast %1 : vector<1x64xf32> to vector<32x64xf32>
    %13 = arith.subf %11, %12 : vector<32x64xf32>
    %c0_5 = arith.constant 0 : index
    %c0_6 = arith.constant 0 : index
    %14 = vector.load %arg3[%c0_5, %c0_6] : memref<32x64xf32, #tpu.memory_space<vmem>>, vector<32x64xf32>
    tpu.vector_store %arg3[%c0_5, %c0_6], %13 {strides = array<i32>} : memref<32x64xf32, #tpu.memory_space<vmem>>, vector<32x64xf32>,
    return
  }
  func.func @transform_0(%arg0: i32) -> (i32, i32) {
    %c0_i32 = arith.constant 0 : i32
    %c0_i32_0 = arith.constant 0 : i32
    return %arg0, %c0_i32 : i32, i32
  }
  func.func @transform_1(%arg0: i32) -> (i32, i32) {
    %c0_i32 = arith.constant 0 : i32
    %c0_i32_0 = arith.constant 0 : i32
    %c0_i32_1 = arith.constant 0 : i32
    return %c0_i32, %c0_i32_0 : i32, i32
  }
  func.func @transform_2(%arg0: i32) -> (i32, i32) {
    %c0_i32 = arith.constant 0 : i32
    %c0_i32_0 = arith.constant 0 : i32
    return %arg0, %c0_i32 : i32, i32
  }
}

</mosaic_0001>

<llo_original>
// kernel: _pairnorm_impl.1
$region0: #{_pairnorm_impl.1}
  #allocation0 [shape = 'u32[]', space=smem, size = 0x4, offset = 0x4, fixed_abs, tag = 'smem constant byte address 0x4 - core index']
  #allocation1 [shape = 'u32[72,128]{1,0:T(1,128)}', space=vmem, size = 0x9000, scoped, tag = 'internal scratch']
  %s0 = inlined_call_operand.vmem [shape: f32[128,64], index: 0, kind: input, shape index: {}]
  %s1 = inlined_call_operand.vmem [shape: f32[1,64], index: 1, kind: input, shape index: {}]
  %s2 = inlined_call_operand.vmem [shape: f32[128,64], index: 2, kind: output, shape index: {}]
  %s3 = sld [smem:[#allocation0]]
  $region41: #{_pairnorm_impl.1} parent=0
    _
  %s5 = ssub.s32 1, %s3
  %s6 = scalar_select 0, %s5, %s3
  loop: start=0, step=1, limit=6
  $region2: #{_pairnorm_impl.1} parent=0 // loop_pre_header
    _
  $region3: #{_pairnorm_impl.1} parent=0 // loop_header
    %s8 = sphi 0, %s12
    %p9 = scmp.ge.s32.totalorder %s8, 6
    %s18 = sphi 0, %s20
    %s21 = sphi 0, %s18
    %s22 = sphi 0, %s21
    %s38 = sphi 0, %s22
    %s42 = sphi 0, %s42
    %s44 = sphi 0, %s42
    %s45 = sphi 0, %s44
    %s59 = sphi 0, %s45
    %s65 = sphi 0, %s67
    %s68 = sphi 0, %s65
    %s69 = sphi 0, %s68
    %s85 = sphi 0, %s69
  $region4: #{_pairnorm_impl.1} parent=0 // loop_header_branch
    %11 = sbr.rel (%p9) target = $region8
  $region5: #{_pairnorm_impl.1} parent=0 // loop_body
    %s13 = ssub.s32 %s8, 1
    %s14 = ssub.s32 %s8, 2
    %s15 = sadd.s32 %s8, 1
    %s16 = ssub.s32 %s8, %s15
    %p17 = scmp.eq.s32.totalorder %s16, 0
    %s19 = sadd.s32 %s18, 1
    %s20 = scalar_select %p17, %s18, %s19
    %p23 = pneg %p17
    %p24 = scmp.eq.s32.totalorder %s8, 3
    %p25 = por %p23, %p24
    %p26 = scmp.ne.s32.totalorder %s18, %s21
    %p27 = scmp.eq.s32.totalorder %s8, 0
    %p28 = por %p26, %p27
    %p29 = scmp.ne.s32.totalorder %s18, %s21
    %p30 = scmp.eq.s32.totalorder %s13, 3
    %p31 = por %p29, %p30
    %p32 = scmp.ne.s32.totalorder %s21, %s22
    %p33 = scmp.eq.s32.totalorder %s13, 0
    %p34 = por %p32, %p33
    %p35 = scmp.ne.s32.totalorder %s21, %s22
    %p36 = scmp.eq.s32.totalorder %s14, 3
    %p37 = por %p35, %p36
    %p39 = scmp.ne.s32.totalorder %s22, %s38
    %p40 = scmp.eq.s32.totalorder %s14, 0
    %p41 = por %p39, %p40
    %s43 = sadd.s32 %s42, 1
    %p46 = scmp.eq.s32.totalorder %s8, 3
    %p47 = scmp.ne.s32.totalorder %s42, %s44
    %p48 = scmp.eq.s32.totalorder %s8, 0
    %p49 = por %p47, %p48
    %p50 = scmp.ne.s32.totalorder %s42, %s44
    %p51 = scmp.eq.s32.totalorder %s13, 3
    %p52 = por %p50, %p51
    %p53 = scmp.ne.s32.totalorder %s44, %s45
    %p54 = scmp.eq.s32.totalorder %s13, 0
    %p55 = por %p53, %p54
    %p56 = scmp.ne.s32.totalorder %s44, %s45
    %p57 = scmp.eq.s32.totalorder %s14, 3
    %p58 = por %p56, %p57
    %p60 = scmp.ne.s32.totalorder %s45, %s59
    %p61 = scmp.eq.s32.totalorder %s14, 0
    %p62 = por %p60, %p61
    %s63 = ssub.s32 %s8, %s15
    %p64 = scmp.eq.s32.totalorder %s63, 0
    %s66 = sadd.s32 %s65, 1
    %s67 = scalar_select %p64, %s65, %s66
    %p70 = pneg %p64
    %p71 = scmp.eq.s32.totalorder %s8, 3
    %p72 = por %p70, %p71
    %p73 = scmp.ne.s32.totalorder %s65, %s68
    %p74 = scmp.eq.s32.totalorder %s8, 0
    %p75 = por %p73, %p74
    %p76 = scmp.ne.s32.totalorder %s65, %s68
    %p77 = scmp.eq.s32.totalorder %s13, 3
    %p78 = por %p76, %p77
    %p79 = scmp.ne.s32.totalorder %s68, %s69
    %p80 = scmp.eq.s32.totalorder %s13, 0
    %p81 = por %p79, %p80
    %p82 = scmp.ne.s32.totalorder %s68, %s69
    %p83 = scmp.eq.s32.totalorder %s14, 3
    %p84 = por %p82, %p83
    %p86 = scmp.ne.s32.totalorder %s69, %s85
    %p87 = scmp.eq.s32.totalorder %s14, 0
    %p88 = por %p86, %p87
    %p89 = scmp.le.s32.totalorder 1, %s8
    %p90 = scmp.lt.s32.totalorder %s8, 5
    %p91 = pnand %p89, %p90
    %p92 = pneg %p91
    // Predicated region
    $region9: #{_pairnorm_impl.1} parent=5 // pred_check
      _
    $region10: #{_pairnorm_impl.1} parent=5 // pred_check_branch
      %94 = sbr.rel (%p91) target = $region12
    $region11: #{_pairnorm_impl.1} parent=5 // pred_region
      %s95 = ssub.s32 %s8, 1
      // Predicated region
      $region13: #{_pairnorm_impl.1} parent=11 // pred_check
        %p96 = pneg %p55
      $region14: #{_pairnorm_impl.1} parent=11 // pred_check_branch
        %98 = sbr.rel (%p96) target = $region16
      $region15: #{_pairnorm_impl.1} parent=11 // pred_region
        _
      $region16: #{_pairnorm_impl.1} parent=11 // pred_fallthru
        _
    $region12: #{_pairnorm_impl.1} parent=5 // pred_fallthru
      _
    %p99 = scmp.lt.s32.totalorder %s8, 4
    // Predicated region
    $region17: #{_pairnorm_impl.1} parent=5 // pred_check
      %p100 = pneg %p99
    $region18: #{_pairnorm_impl.1} parent=5 // pred_check_branch
      %102 = sbr.rel (%p100) target = $region20
    $region19: #{_pairnorm_impl.1} parent=5 // pred_region
      // Predicated region
      $region21: #{_pairnorm_impl.1} parent=19 // pred_check
        %p103 = pneg %p28
      $region22: #{_pairnorm_impl.1} parent=19 // pred_check_branch
        %105 = sbr.rel (%p103) target = $region24
      $region23: #{_pairnorm_impl.1} parent=19 // pred_region
        %s106 = smul.u32 4, %s8
        %p107 = scmp.lt.s32.totalorder %s106, 15
        %s108 = scalar_select %p107, %s106, 15
        %s109 = smul.addr %s108, 8
        %s110 = scalar_lea.vmem %s0, %s109
        %s111 = smul.u32 4, %s8
      $region24: #{_pairnorm_impl.1} parent=19 // pred_fallthru
        _
    $region20: #{_pairnorm_impl.1} parent=5 // pred_fallthru
      _
    %p112 = scmp.le.s32.totalorder 1, %s8
    %p113 = scmp.lt.s32.totalorder %s8, 5
    %p114 = pnand %p112, %p113
    %p115 = pneg %p114
    // Predicated region
    $region25: #{_pairnorm_impl.1} parent=5 // pred_check
      _
    $region26: #{_pairnorm_impl.1} parent=5 // pred_check_branch
      %117 = sbr.rel (%p114) target = $region28
    $region27: #{_pairnorm_impl.1} parent=5 // pred_region
      %s118 = ssub.s32 %s8, 1
      %s119 = smul.u32 4, %s13
      %p120 = scmp.lt.s32.totalorder %s119, 15
      %s121 = scalar_select %p120, %s119, 15
      %s122 = smul.addr %s121, 8
      %s123 = scalar_lea.vmem %s0, %s122
      %p124 = pneg %p34
      %p125 = pneg %p31
      %p126 = pneg %p55
      %p127 = pneg %p52
      %p128 = pneg %p81
      %p129 = pneg %p78
      %s130 = smul.u32 4, %s13
      %p131 = scmp.lt.s32.totalorder %s130, 15
      %s132 = scalar_select %p131, %s130, 15
      %s133 = smul.addr %s132, 8
      %s134 = scalar_lea.vmem %s2, %s133
      %s135 = smul.u32 4, %s13
      %p136 = scmp.lt.s32.totalorder %s135, 15
      %s137 = scalar_select %p136, %s135, 15
      %s138 = smul.addr %s137, 8
      %s139 = scalar_lea.vmem %s0, %s138
      %s140 = smul.u32 4, %s13
      %s141 = smul.u32 4, %s13
      %p142 = scmp.lt.s32.totalorder %s141, 15
      %s143 = scalar_select %p142, %s141, 15
      %s144 = smul.addr %s143, 8
      %s145 = scalar_lea.vmem %s2, %s144
      %s146 = smul.u32 4, %s13
      %v147 = vld [vmem:[%s139] sm:$0xff]
      %v148 = vld [vmem:[%s139 + $0x8] sm:$0xff]
      %v149 = vld [vmem:[%s139 + $0x10] sm:$0xff]
      %v150 = vld [vmem:[%s139 + $0x18] sm:$0xff]
      %v151 = vld [vmem:[%s1] sm:$0x1]
      %v152 = vmul.f32 %v147, %v147
      %v153 = vmul.f32 %v148, %v148
      %v154 = vmul.f32 %v149, %v149
      %v155 = vmul.f32 %v150, %v150
      %vm156 = vcmask 523264
      %v157 = vsel %vm156, %v152, 0.0
      %158 = vadd.xlane.f32.xlu0 %v157
      %v159 = vpop.xlane.xlu0 %158
      %v160 = vsel %vm156, %v153, 0.0
      %161 = vadd.xlane.f32.xlu0 %v160
      %v162 = vpop.xlane.xlu0 %161
      %v163 = vsel %vm156, %v154, 0.0
      %164 = vadd.xlane.f32.xlu0 %v163
      %v165 = vpop.xlane.xlu0 %164
      %v166 = vsel %vm156, %v155, 0.0
      %167 = vadd.xlane.f32.xlu0 %v166
      %v168 = vpop.xlane.xlu0 %167
      %v169 = vadd.f32 %v159, 1e-06
      %v170 = vadd.f32 %v162, 1e-06
      %v171 = vadd.f32 %v165, 1e-06
      %v172 = vadd.f32 %v168, 1e-06
      %v173 = vrsqrt.pop %v169
      %v174 = vmul.f32 %v173, %v169
      %v175 = vmul.f32 %v174, %v173
      %v176 = vmul.f32 0.5, %v175
      %v177 = vsub.f32 1.5, %v176
      %v178 = vmul.f32 %v173, %v177
      %vm179 = vweird.f32 %v169
      %vm180 = vweird.f32 %v173
      %vm181 = vmor %vm179, %vm180
      %v182 = vsel %vm181, %v173, %v178
      %v183 = vrsqrt.pop %v170
      %v184 = vmul.f32 %v183, %v170
      %v185 = vmul.f32 %v184, %v183
      %v186 = vmul.f32 0.5, %v185
      %v187 = vsub.f32 1.5, %v186
      %v188 = vmul.f32 %v183, %v187
      %vm189 = vweird.f32 %v170
      %vm190 = vweird.f32 %v183
      %vm191 = vmor %vm189, %vm190
      %v192 = vsel %vm191, %v183, %v188
      %v193 = vrsqrt.pop %v171
      %v194 = vmul.f32 %v193, %v171
      %v195 = vmul.f32 %v194, %v193
      %v196 = vmul.f32 0.5, %v195
      %v197 = vsub.f32 1.5, %v196
      %v198 = vmul.f32 %v193, %v197
      %vm199 = vweird.f32 %v171
      %vm200 = vweird.f32 %v193
      %vm201 = vmor %vm199, %vm200
      %v202 = vsel %vm201, %v193, %v198
      %v203 = vrsqrt.pop %v172
      %v204 = vmul.f32 %v203, %v172
      %v205 = vmul.f32 %v204, %v203
      %v206 = vmul.f32 0.5, %v205
      %v207 = vsub.f32 1.5, %v206
      %v208 = vmul.f32 %v203, %v207
      %vm209 = vweird.f32 %v172
      %vm210 = vweird.f32 %v203
      %vm211 = vmor %vm209, %vm210
      %v212 = vsel %vm211, %v203, %v208
      %v213 = vmul.f32 %v147, %v182
      %v214 = vmul.f32 %v148, %v192
      %v215 = vmul.f32 %v149, %v202
      %v216 = vmul.f32 %v150, %v212
      %v218 = vperm.slane %v151, 0
      %v220 = vsub.f32 %v213, %v218
      %v221 = vsub.f32 %v214, %v218
      %v222 = vsub.f32 %v215, %v218
      %v223 = vsub.f32 %v216, %v218
      %224 = vst.msk [vmem:[%s145] sm:$0xff] %vm156, %v220
      %225 = vst.msk [vmem:[%s145 + $0x8] sm:$0xff] %vm156, %v221
      %226 = vst.msk [vmem:[%s145 + $0x10] sm:$0xff] %vm156, %v222
      %227 = vst.msk [vmem:[%s145 + $0x18] sm:$0xff] %vm156, %v223
      %s228 = smul.u32 4, %s13
      %p229 = scmp.lt.s32.totalorder %s228, 15
      %s230 = scalar_select %p229, %s228, 15
      %s231 = smul.addr %s230, 8
      %s232 = scalar_lea.vmem %s2, %s231
      // Predicated region
      $region29: #{_pairnorm_impl.1} parent=27 // pred_check
        %p233 = pneg %p78
      $region30: #{_pairnorm_impl.1} parent=27 // pred_check_branch
        %235 = sbr.rel (%p233) target = $region32
      $region31: #{_pairnorm_impl.1} parent=27 // pred_region
        %s236 = smul.u32 4, %s13
      $region32: #{_pairnorm_impl.1} parent=27 // pred_fallthru
        _
    $region28: #{_pairnorm_impl.1} parent=5 // pred_fallthru
      _
    %p237 = scmp.le.s32.totalorder 2, %s8
    // Predicated region
    $region33: #{_pairnorm_impl.1} parent=5 // pred_check
      %p238 = pneg %p237
    $region34: #{_pairnorm_impl.1} parent=5 // pred_check_branch
      %240 = sbr.rel (%p238) target = $region36
    $region35: #{_pairnorm_impl.1} parent=5 // pred_region
      %s241 = ssub.s32 %s8, 2
      // Predicated region
      $region37: #{_pairnorm_impl.1} parent=35 // pred_check
        %p242 = pneg %p84
      $region38: #{_pairnorm_impl.1} parent=35 // pred_check_branch
        %244 = sbr.rel (%p242) target = $region40
      $region39: #{_pairnorm_impl.1} parent=35 // pred_region
        %s245 = smul.u32 4, %s14
        %p246 = scmp.lt.s32.totalorder %s245, 15
        %s247 = scalar_select %p246, %s245, 15
        %s248 = smul.addr %s247, 8
        %s249 = scalar_lea.vmem %s2, %s248
      $region40: #{_pairnorm_impl.1} parent=35 // pred_fallthru
        _
    $region36: #{_pairnorm_impl.1} parent=5 // pred_fallthru
      _
  $region6: #{_pairnorm_impl.1} parent=0 // loop_footer
    %s12 = sadd.s32 1, %s8
  $region7: #{_pairnorm_impl.1} parent=0 // loop_footer_branch
    %7 = sbr.rel target = $region3
  $region8: #{_pairnorm_impl.1} parent=0 // loop_exit
    _

</llo_original>
